<compile_context>
chip_gen: v7x
topology: tpu7x:2x2x1
jax: 0.10.0
libtpu: 0.0.40
codegen_flags: <defaults>
</compile_context>

<pallas_src>
import functools
import math

import jax
import jax.numpy as jnp
from jax.experimental import pallas as pl
from jax.experimental.pallas import tpu as pltpu


def _pos_enc_kernel(scale_ref, x_ref, pe_ref, o_ref, *, reps):
    # scale_ref: (1,) f32 scalar-prefetch ref in SMEM
    # x_ref/o_ref: (TS, B*D) tiles ; pe_ref: (TS, D or B*D) f32 tile
    s = scale_ref[0]
    pe = s * pe_ref[...]                                   # f32, scaled in-kernel
    if reps > 1:
        # Lane-axis replicate so column b*D + d holds pe[:, d]; this path is
        # only taken when D % 128 == 0, so the concat is 128-lane aligned.
        pe = jnp.concatenate([pe] * reps, axis=-1)         # (TS, B*D)
    o_ref[...] = (x_ref[...].astype(jnp.float32) + pe).astype(o_ref.dtype)


def make_pe_table(max_len, d_model, dtype=jnp.float32):
    """Same construction as the PyTorch __init__ (sin on even cols, cos on odd)."""
    position = jnp.arange(max_len, dtype=jnp.float32)[:, None]            # (max_len, 1)
    div_term = jnp.exp(jnp.arange(0, d_model, 2, dtype=jnp.float32)
                       * (-math.log(10000.0) / d_model))                  # (ceil(D/2),)
    angles = position * div_term                                          # (max_len, ceil(D/2))
    pe = jnp.zeros((max_len, d_model), dtype=jnp.float32)
    pe = pe.at[:, 0::2].set(jnp.sin(angles))
    pe = pe.at[:, 1::2].set(jnp.cos(angles)[:, : d_model // 2])
    return pe.astype(dtype)


def _choose_tile_rows(n_rows, row_bytes, target_block_bytes=2 << 20):
    """Rows per grid step: multiple of 8 sublanes, ~2 MiB of x per block so the
    double-buffered in/out/pe blocks fit comfortably inside the tightest scoped
    VMEM budget across generations (v7x 32 MiB scoped; v5e 16 MiB default)."""
    ts = (target_block_bytes // max(row_bytes, 1)) // 8 * 8
    ts = max(ts, 8)
    return min(ts, n_rows)


def positional_encoding_forward(x, pe_table, scale):
    """x: (S, B, D) seq-first ; pe_table: (max_len, D) f32 buffer ; scale: scalar param."""
    S, B, D = x.shape
    BD = B * D

    x2 = x.reshape(S, BD)                                  # free contiguous collapse
    pe_slice = pe_table[:S, :].astype(jnp.float32)         # (S, D), keep f32

    if D % 128 == 0 and B > 1:
        # Keep pe at 1/B of x's HBM traffic; replicate along lanes in-kernel.
        pe_in, reps = pe_slice, B
    else:
        # Small / lane-unaligned D: tile pe in the wrapper (extra bytes are tiny)
        # so the kernel body is a pure lane-dense 2D elementwise add.
        pe_in, reps = jnp.tile(pe_slice, (1, B)), 1        # (S, B*D)
    Dp = pe_in.shape[1]

    scale_arr = jnp.asarray(scale, dtype=jnp.float32).reshape(1)

    row_bytes = BD * x.dtype.itemsize + Dp * 4             # x row + pe row per sublane
    ts = _choose_tile_rows(S, row_bytes)
    grid = (pl.cdiv(S, ts),)                               # >=2 steps for realistic S

    kernel = functools.partial(_pos_enc_kernel, reps=reps)

    out2 = pl.pallas_call(
        kernel,
        out_shape=jax.ShapeDtypeStruct((S, BD), x.dtype),
        grid_spec=pltpu.PrefetchScalarGridSpec(
            # scale lands in SMEM before the grid runs and is passed as the
            # first kernel ref; index_maps receive it as a trailing arg.
            num_scalar_prefetch=1,
            grid=grid,
            in_specs=[
                pl.BlockSpec((ts, BD), lambda i, sc: (i, 0)),   # x tile (lane-dense slab)
                pl.BlockSpec((ts, Dp), lambda i, sc: (i, 0)),   # pe tile
            ],
            out_specs=pl.BlockSpec((ts, BD), lambda i, sc: (i, 0)),
        ),
        compiler_params=pltpu.CompilerParams(
            dimension_semantics=("parallel",)),
    )(scale_arr, x2, pe_in)

    return out2.reshape(S, B, D)


if __name__ == "__main__":
    key = jax.random.PRNGKey(0)

    # Module config (small, consistent with the forward): d_model=32, max_len=64
    d_model, max_len = 32, 64
    S, B = 8, 2                       # x is (seq_len, batch, d_model)

    x = jax.random.normal(key, (S, B, d_model), dtype=jnp.float32)
    pe_table = make_pe_table(max_len, d_model)             # deterministic buffer
    scale = jnp.ones((), dtype=jnp.float32)                # nn.Parameter(torch.ones(1))

    out = positional_encoding_forward(x, pe_table, scale)
    out = jax.block_until_ready(out)

    # Reference check in plain JAX (dropout is identity in eval mode)
    ref = x + scale * pe_table[:S, None, :]
    assert out.shape == (S, B, d_model)
    assert jnp.allclose(out, ref, atol=1e-6, rtol=1e-6)

    # Also exercise the lane-aligned (D % 128 == 0) in-kernel replicate path.
    d_model2, S2, B2 = 128, 16, 2
    key2 = jax.random.PRNGKey(0)
    x2 = jax.random.normal(key2, (S2, B2, d_model2), dtype=jnp.float32)
    pe_table2 = make_pe_table(128, d_model2)
    scale2 = jnp.full((), 0.5, dtype=jnp.float32)
    out2 = jax.block_until_ready(positional_encoding_forward(x2, pe_table2, scale2))
    ref2 = x2 + scale2 * pe_table2[:S2, None, :]
    assert jnp.allclose(out2, ref2, atol=1e-6, rtol=1e-6)

    print("KERNEL_OK")
</pallas_src>

<mosaic_0001>
module attributes {stable_mosaic.version = 11 : i64} {
  func.func @_pos_enc_kernel(%arg0: i32, %arg1: memref<1xf32, #tpu.memory_space<smem>>, %arg2: memref<8x64xf32, #tpu.memory_space<vmem>>, %arg3: memref<8x64xf32, #tpu.memory_space<vmem>>, %arg4: memref<8x64xf32, #tpu.memory_space<vmem>>) attributes {dimension_semantics = [#tpu.dimension_semantics<parallel>], iteration_bounds = array<i64: 1>, scalar_prefetch = 1 : i64, scratch_operands = 0 : i64, tpu.core_type = #tpu.core_type<tc>, window_params = [{transform_indices = @transform_0, window_bounds = array<i64: 8, 64>}, {transform_indices = @transform_1, window_bounds = array<i64: 8, 64>}, {transform_indices = @transform_2, window_bounds = array<i64: 8, 64>}]} {
    %c0 = arith.constant 0 : index
    %0 = memref.load %arg1[%c0] : memref<1xf32, #tpu.memory_space<smem>>
    %c0_0 = arith.constant 0 : index
    %c0_1 = arith.constant 0 : index
    %1 = vector.load %arg3[%c0_0, %c0_1] : memref<8x64xf32, #tpu.memory_space<vmem>>, vector<8x64xf32>
    %2 = vector.broadcast %0 : f32 to vector<8x64xf32>
    %3 = arith.mulf %2, %1 : vector<8x64xf32>
    %c0_2 = arith.constant 0 : index
    %c0_3 = arith.constant 0 : index
    %4 = vector.load %arg2[%c0_2, %c0_3] : memref<8x64xf32, #tpu.memory_space<vmem>>, vector<8x64xf32>
    %5 = arith.addf %4, %3 : vector<8x64xf32>
    %c0_4 = arith.constant 0 : index
    %c0_5 = arith.constant 0 : index
    %6 = vector.load %arg4[%c0_4, %c0_5] : memref<8x64xf32, #tpu.memory_space<vmem>>, vector<8x64xf32>
    tpu.vector_store %arg4[%c0_4, %c0_5], %5 {strides = array<i32>} : memref<8x64xf32, #tpu.memory_space<vmem>>, vector<8x64xf32>,
    return
  }
  func.func @transform_0(%arg0: i32, %arg1: memref<1xf32, #tpu.memory_space<smem>>) -> (i32, i32) {
    %c0_i32 = arith.constant 0 : i32
    %c0_i32_0 = arith.constant 0 : i32
    return %arg0, %c0_i32 : i32, i32
  }
  func.func @transform_1(%arg0: i32, %arg1: memref<1xf32, #tpu.memory_space<smem>>) -> (i32, i32) {
    %c0_i32 = arith.constant 0 : i32
    %c0_i32_0 = arith.constant 0 : i32
    return %arg0, %c0_i32 : i32, i32
  }
  func.func @transform_2(%arg0: i32, %arg1: memref<1xf32, #tpu.memory_space<smem>>) -> (i32, i32) {
    %c0_i32 = arith.constant 0 : i32
    %c0_i32_0 = arith.constant 0 : i32
    return %arg0, %c0_i32 : i32, i32
  }
}

</mosaic_0001>

<llo_original>
// kernel: tpu_custom_call.1
$region0: #{tpu_custom_call.1}
  #allocation0 [shape = 'u32[]', space=smem, size = 0x4, offset = 0x4, fixed_abs, tag = 'smem constant byte address 0x4 - core index']
  #allocation1 [shape = 'u32[144,128]{1,0:T(1,128)}', space=vmem, size = 0x12000, scoped, tag = 'internal scratch']
  #allocation2 [shape = 's32[1]{0}', space=sflag, size = 0x4, scoped, tag = 'scoped memory for tpu_custom_call.1']
  #allocation3 [shape = 'f32[1]{0:T(128)S(6)}', space=smem, size = 0x200, scoped, tag = 'prefetched SMEM operand 0']
  %s0 = inlined_call_operand.<no memory space> [shape: f32[1], index: 0, kind: input, shape index: {}]
  %s1 = inlined_call_operand.hbm [shape: f32[8,64], index: 1, kind: input, shape index: {}]
  %s2 = inlined_call_operand.hbm [shape: f32[8,64], index: 2, kind: input, shape index: {}]
  %s3 = inlined_call_operand.hbm [shape: f32[8,64], index: 3, kind: output, shape index: {}]
  %s4 = sld [smem:[#allocation0]]
  $region26: #{tpu_custom_call.1} parent=0
    _
  %s6 = ssub.s32 1, %s4
  %s7 = scalar_select 0, %s6, %s4
  %8 = sst [smem:[#allocation3]] %s0
  $region1: #{tpu_custom_call.1} parent=0
    #allocation4 [shape = 'u8[4096]{0}', space=vmem, size = 0x1000, scoped, tag = 'input window, operand 1, single buffered']
    #allocation5 [shape = 's32[1]{0}', space=sflag, size = 0x4, scoped, tag = 'scoped memory for tpu_custom_call.1']
    #allocation6 [shape = 's32[1]{0}', space=sflag, size = 0x4, scoped, tag = 'scoped memory for tpu_custom_call.1']
    #allocation7 [shape = 'u8[4096]{0}', space=vmem, size = 0x1000, scoped, tag = 'input window, operand 2, single buffered']
    #allocation8 [shape = 's32[1]{0}', space=sflag, size = 0x4, scoped, tag = 'scoped memory for tpu_custom_call.1']
    #allocation9 [shape = 'u8[4096]{0}', space=vmem, size = 0x1000, scoped, tag = 'output window, operand 0, single buffered']
    %9 = vsyncpa [#allocation5], 0
    %10 = vsyncpa [#allocation8], 0
    %11 = vsyncpa [#allocation6], 0
    // Predicated region
    $region2: #{tpu_custom_call.1} parent=1 // pred_check
      _
    $region3: #{tpu_custom_call.1} parent=1 // pred_check_branch
      %13 = sbr.rel (0) target = $region5
    $region4: #{tpu_custom_call.1} parent=1 // pred_region
      %s15 = ssub.s32 128, 128
      %16 = vsyncadd [#allocation5], %s15
      %s18 = sshll.u32 [#allocation4], 4
      %s19 = int_to_ptr.vmem [resolvable:$true] %s18
      %21 = dma.hbm_to_vmem [thread:$0]  %s1, 128, %s19, [#allocation5]
    $region5: #{tpu_custom_call.1} parent=1 // pred_fallthru
      _
    // Predicated region
    $region6: #{tpu_custom_call.1} parent=1 // pred_check
      _
    $region7: #{tpu_custom_call.1} parent=1 // pred_check_branch
      %23 = sbr.rel (0) target = $region9
    $region8: #{tpu_custom_call.1} parent=1 // pred_region
      %s25 = ssub.s32 128, 128
      %26 = vsyncadd [#allocation8], %s25
      %s28 = sshll.u32 [#allocation7], 4
      %s29 = int_to_ptr.vmem [resolvable:$true] %s28
      %31 = dma.hbm_to_vmem [thread:$0]  %s2, 128, %s29, [#allocation8]
    $region9: #{tpu_custom_call.1} parent=1 // pred_fallthru
      _
    // Predicated region
    $region10: #{tpu_custom_call.1} parent=1 // pred_check
      _
    $region11: #{tpu_custom_call.1} parent=1 // pred_check_branch
      %33 = sbr.rel (0) target = $region13
    $region12: #{tpu_custom_call.1} parent=1 // pred_region
      %34 = dma.done [#allocation5], 128
    $region13: #{tpu_custom_call.1} parent=1 // pred_fallthru
      _
    // Predicated region
    $region14: #{tpu_custom_call.1} parent=1 // pred_check
      _
    $region15: #{tpu_custom_call.1} parent=1 // pred_check_branch
      %36 = sbr.rel (0) target = $region17
    $region16: #{tpu_custom_call.1} parent=1 // pred_region
      %37 = dma.done [#allocation8], 128
    $region17: #{tpu_custom_call.1} parent=1 // pred_fallthru
      _
    %s38 = sld [smem:[#allocation3]]
    %v39 = vld [vmem:[#allocation7] sm:$0xff]
    %v40 = vstv %s38
    %v41 = vmul.f32 %v40, %v39
    %v42 = vld [vmem:[#allocation4] sm:$0xff]
    %v43 = vadd.f32 %v42, %v41
    %vm44 = vcmask 523264
    %45 = vst.msk [vmem:[#allocation9] sm:$0xff] %vm44, %v43
    // Predicated region
    $region18: #{tpu_custom_call.1} parent=1 // pred_check
      _
    $region19: #{tpu_custom_call.1} parent=1 // pred_check_branch
      %47 = sbr.rel (0) target = $region21
    $region20: #{tpu_custom_call.1} parent=1 // pred_region
      %s49 = ssub.s32 128, 128
      %50 = vsyncadd [#allocation6], %s49
      %s52 = sshll.u32 [#allocation9], 4
      %s53 = int_to_ptr.vmem [resolvable:$true] %s52
      %55 = dma.vmem_to_hbm [thread:$0]  %s53, 128, %s3, [#allocation6]
    $region21: #{tpu_custom_call.1} parent=1 // pred_fallthru
      _
    // Predicated region
    $region22: #{tpu_custom_call.1} parent=1 // pred_check
      _
    $region23: #{tpu_custom_call.1} parent=1 // pred_check_branch
      %57 = sbr.rel (0) target = $region25
    $region24: #{tpu_custom_call.1} parent=1 // pred_region
      %58 = dma.done [#allocation6], 128
    $region25: #{tpu_custom_call.1} parent=1 // pred_fallthru
      _
    %59 = vsyncpa [#allocation5], 1
    %60 = vsyncpa [#allocation8], 1
    %61 = vsyncpa [#allocation6], 1

</llo_original>
